<compile_context>
chip_gen: v5e
topology: v5e:2x2
jax: 0.10.0
libtpu: 0.0.40
codegen_flags: <defaults>
</compile_context>

<pallas_src>
import functools

import jax
import jax.numpy as jnp
from jax.experimental import pallas as pl
from jax.experimental.pallas import tpu as pltpu

_MAX_TILE_ROWS = 1024     # diminishing returns past ~512-1024 rows/tile
_F32_EPILOGUE_ROWS = 4    # ~4 (rows, F) f32 intermediates live during the LayerNorm epilogue


def _round_up(x, m):
    return ((x + m - 1) // m) * m


def _row_multiple(dtype):
    # sublane packing: f32 -> 8 rows/vreg, bf16 -> 16, int8/fp8 -> 32
    return max(8, 32 // jnp.dtype(dtype).itemsize)


@functools.lru_cache(maxsize=None)
def _vmem_budgets():
    """(data_budget_bytes, scoped_vmem_limit_bytes) chosen per TPU generation."""
    vmem_cap = 64 * 1024 * 1024                # conservative default (v7x per-TC VMEM)
    try:
        info = pltpu.get_tpu_info()
        cap = getattr(info, "vmem_capacity_bytes", None)
        if cap:
            vmem_cap = int(cap)
    except Exception:
        pass
    if vmem_cap >= 100 * 1024 * 1024:          # v5e / v6e: 128 MiB physical VMEM
        return 48 * 1024 * 1024, 96 * 1024 * 1024
    return 24 * 1024 * 1024, 48 * 1024 * 1024  # v7x: 64 MiB physical VMEM


@functools.lru_cache(maxsize=None)
def _mxu_row_multiple():
    """MXU-friendly row-tile multiple: 256 on v6e/v7x (2x256^2 MXU), 128 before."""
    try:
        kind = jax.devices()[0].device_kind.lower()
    except Exception:
        return 256
    return 256 if ("v6" in kind or "v7" in kind) else 128


def _pick_tile_rows(rows, per_row_bytes, dtype, budget, row_align=None):
    """Largest row tile (multiple of `row_align`) whose pipelined buffers fit `budget`."""
    align = max(int(row_align or 0), _row_multiple(dtype))
    t = budget // max(int(per_row_bytes), 1)
    t = min(t, _MAX_TILE_ROWS)
    if rows > align:                                   # keep >= 2 row steps (v7x: 2 TCs)
        t = min(t, _round_up(pl.cdiv(rows, 2), align))
    t = max(align, (t // align) * align)               # alignment floor beats the budget trim
    t = min(t, _round_up(rows, align))                 # never bigger than one covering block
    steps = pl.cdiv(rows, t)
    if steps > 1 and steps % 2 == 1:                   # prefer an even step count (v7x balance)
        t2 = max(align, _round_up(pl.cdiv(rows, steps + 1), align))
        if t2 <= t and pl.cdiv(rows, t2) % 2 == 0:
            t = t2
    return int(t)


# ----------------------------------------------------------------------------
# Kernel 1: residual add + LayerNorm (generic path; sublayer output precomputed)
# ----------------------------------------------------------------------------
def _add_layernorm_kernel(x_ref, y_ref, g_ref, b_ref, o_ref, *, eps):
    x = x_ref[...].astype(jnp.float32)
    y = y_ref[...].astype(jnp.float32)
    z = x + y                                          # residual + (identity) dropout

    n = z.shape[-1]
    mean = jnp.mean(z, axis=-1, keepdims=True)
    d = z - mean
    var_unbiased = jnp.sum(d * d, axis=-1, keepdims=True) * (1.0 / (n - 1))
    # exact reciprocal to match torch to ~1e-6 (kernel is HBM-bound; EUP win negligible)
    inv = pl.reciprocal(jnp.sqrt(var_unbiased) + eps, approx=False)

    out = g_ref[...].astype(jnp.float32) * d * inv + b_ref[...].astype(jnp.float32)
    o_ref[...] = out.astype(o_ref.dtype)


def sublayer_connection(x, sublayer, gamma, beta, *, eps=1e-6, tile_rows=None):
    """out = LayerNorm(x + dropout(sublayer(x))) with eval-mode (identity) dropout.

    Generic path: `sublayer` is an arbitrary JAX callable (runs outside the kernel).
    Prefer `sublayer_connection_fused_dense` whenever the sublayer is a dense matmul
    (it avoids the HBM round trip for the sublayer output).
    """
    B, S, F = x.shape
    y = sublayer(x)   # glue: arbitrary sublayer stays in plain JAX
    # TODO(synk): training-mode dropout (random mask) not implemented; eval-mode identity.

    rows = B * S
    itemsize = jnp.dtype(x.dtype).itemsize
    data_budget, vmem_limit = _vmem_budgets()
    if tile_rows is None:
        # x, y, out streams double-buffered + f32 LayerNorm intermediates
        per_row = 3 * 2 * F * itemsize + _F32_EPILOGUE_ROWS * 4 * F
        tile_rows = _pick_tile_rows(rows, per_row, x.dtype, data_budget)

    x2 = x.reshape(rows, F)
    y2 = y.reshape(rows, F)
    g2 = gamma.reshape(1, F).astype(jnp.float32)
    b2 = beta.reshape(1, F).astype(jnp.float32)

    # Ragged rows: grid = cdiv and Pallas masks the trailing partial block — no
    # jnp.pad of inputs and no out[:rows] copy (saves up to ~2x HBM traffic).
    grid = (pl.cdiv(rows, tile_rows),)
    kernel = functools.partial(_add_layernorm_kernel, eps=eps)

    out2 = pl.pallas_call(
        kernel,
        out_shape=jax.ShapeDtypeStruct((rows, F), x.dtype),
        grid_spec=pltpu.PrefetchScalarGridSpec(
            num_scalar_prefetch=0,
            grid=grid,
            in_specs=[
                pl.BlockSpec((tile_rows, F), lambda i: (i, 0)),
                pl.BlockSpec((tile_rows, F), lambda i: (i, 0)),
                pl.BlockSpec((1, F), lambda i: (0, 0)),
                pl.BlockSpec((1, F), lambda i: (0, 0)),
            ],
            out_specs=pl.BlockSpec((tile_rows, F), lambda i: (i, 0)),
        ),
        compiler_params=pltpu.CompilerParams(
            dimension_semantics=("parallel",),
            vmem_limit_bytes=vmem_limit,
        ),
    )(x2, y2, g2, b2)

    return out2.reshape(B, S, F)


# ----------------------------------------------------------------------------
# Kernel 2: fully fused dense sublayer:  LayerNorm(x + (x @ W + bias))
# ----------------------------------------------------------------------------
def _fused_dense_kernel(xk_ref, w_ref, bias_ref, g_ref, b_ref, o_ref, acc_ref,
                        *, eps, tile_k):
    k = pl.program_id(1)

    @pl.when(k == 0)
    def _init():
        acc_ref[...] = jnp.zeros_like(acc_ref)

    xk = xk_ref[...]
    acc_ref[...] += jnp.dot(xk, w_ref[...], preferred_element_type=jnp.float32)

    # Residual folded into the accumulator: W is square, so this K-slice of x is
    # also the matching column slice of the residual -> x is read from HBM once.
    if acc_ref.shape[-1] == tile_k:           # single K step: full-width add
        acc_ref[...] += xk.astype(jnp.float32)
    else:                                     # 128-aligned dynamic column slice
        col0 = pl.multiple_of(k * tile_k, tile_k)
        acc_ref[:, pl.ds(col0, tile_k)] += xk.astype(jnp.float32)

    @pl.when(k == pl.num_programs(1) - 1)
    def _epilogue():
        z = acc_ref[...] + bias_ref[...].astype(jnp.float32)
        n = z.shape[-1]
        mean = jnp.mean(z, axis=-1, keepdims=True)
        d = z - mean
        var_unbiased = jnp.sum(d * d, axis=-1, keepdims=True) * (1.0 / (n - 1))
        inv = pl.reciprocal(jnp.sqrt(var_unbiased) + eps, approx=False)
        out = g_ref[...].astype(jnp.float32) * d * inv + b_ref[...].astype(jnp.float32)
        o_ref[...] = out.astype(o_ref.dtype)


def sublayer_connection_fused_dense(x, W, bias, gamma, beta, *, eps=1e-6,
                                    tile_rows=None, tile_k=None):
    """Fused path for sublayer(x) = x @ W + bias.

    K-tiled MXU matmul with a resident f32 accumulator; residual, bias and LayerNorm
    all run in-kernel. The sublayer output never touches HBM.
    """
    B, S, F = x.shape
    assert W.shape == (F, F) and bias.shape == (F,)

    rows = B * S
    itemsize = jnp.dtype(x.dtype).itemsize
    data_budget, vmem_limit = _vmem_budgets()
    mxu_mult = _mxu_row_multiple()

    if tile_k is None:
        # Tile the contraction dim once W stops fitting comfortably; cap at 512 so the
        # double-buffered W slice never crushes tile_rows below MXU-optimal sizes.
        tile_k = F
        if F > 1024:
            for cand in (512, 384, 256, 128):
                if F % cand == 0:
                    tile_k = cand
                    break
    assert F % tile_k == 0
    # TODO(synk): for very large F (>~4096) also tile the output (N) dim with a
    # two-pass LayerNorm so the f32 accumulator stays small.

    if tile_rows is None:
        # per row: xk slice + out row (double-buffered), f32 accumulator, f32 epilogue temps
        per_row = (2 * tile_k * itemsize + 2 * F * itemsize
                   + 4 * F + _F32_EPILOGUE_ROWS * 4 * F)
        w_bytes = 2 * tile_k * F * jnp.dtype(W.dtype).itemsize   # W K-slice, double-buffered
        budget = max(data_budget - w_bytes, 1 << 20)
        row_align = mxu_mult if rows >= mxu_mult else None
        tile_rows = _pick_tile_rows(rows, per_row, x.dtype, budget, row_align)

    x2 = x.reshape(rows, F)
    bias2 = bias.reshape(1, F).astype(jnp.float32)
    g2 = gamma.reshape(1, F).astype(jnp.float32)
    b2 = beta.reshape(1, F).astype(jnp.float32)

    grid = (pl.cdiv(rows, tile_rows), F // tile_k)
    kernel = functools.partial(_fused_dense_kernel, eps=eps, tile_k=tile_k)

    # Scheduling hint for XLA around the custom call (e.g. next layer's weight prefetch).
    cost = pl.CostEstimate(
        flops=2 * rows * F * F,
        transcendentals=0,
        bytes_accessed=(rows * F * itemsize                     # x read (once)
                        + F * F * jnp.dtype(W.dtype).itemsize   # W read
                        + rows * F * itemsize                   # out write
                        + 3 * F * 4),                           # bias / gamma / beta
    )

    out2 = pl.pallas_call(
        kernel,
        out_shape=jax.ShapeDtypeStruct((rows, F), x.dtype),
        grid_spec=pltpu.PrefetchScalarGridSpec(
            num_scalar_prefetch=0,
            grid=grid,
            in_specs=[
                pl.BlockSpec((tile_rows, tile_k), lambda i, k: (i, k)),  # x K-slice (LHS + residual)
                pl.BlockSpec((tile_k, F), lambda i, k: (k, 0)),          # W K-slice
                pl.BlockSpec((1, F), lambda i, k: (0, 0)),               # bias
                pl.BlockSpec((1, F), lambda i, k: (0, 0)),               # gamma
                pl.BlockSpec((1, F), lambda i, k: (0, 0)),               # beta
            ],
            out_specs=pl.BlockSpec((tile_rows, F), lambda i, k: (i, 0)),
            scratch_shapes=[pltpu.VMEM((tile_rows, F), jnp.float32)],
        ),
        compiler_params=pltpu.CompilerParams(
            dimension_semantics=("parallel", "arbitrary"),
            vmem_limit_bytes=vmem_limit,
        ),
        cost_estimate=cost,
    )(x2, W, bias2, g2, b2)

    return out2.reshape(B, S, F)


def _reference(x, y, gamma, beta, eps):
    """Pure-JAX reference with torch semantics (unbiased std, eps added to std)."""
    F = x.shape[-1]
    z = x + y
    mean = jnp.mean(z, axis=-1, keepdims=True)
    d = z - mean
    std = jnp.sqrt(jnp.sum(d * d, axis=-1, keepdims=True) / (F - 1))
    return gamma * d / (std + eps) + beta


if __name__ == "__main__":
    key = jax.random.PRNGKey(0)
    F = 128                         # hidden (size); 128 keeps the lane axis dense
    eps = 1e-6

    kx, kw, kb, kx2 = jax.random.split(key, 4)
    W = jax.random.normal(kw, (F, F), dtype=jnp.float32) * 0.02
    b = jax.random.normal(kb, (F,), dtype=jnp.float32) * 0.01
    sublayer = lambda t: jnp.einsum("bsf,fg->bsg", t, W) + b

    # LayerNorm params exactly as in the module's __init__:
    gamma = jnp.ones((F,), dtype=jnp.float32)    # a_2
    beta = jnp.zeros((F,), dtype=jnp.float32)    # b_2

    # --- shape 1: tile-aligned rows (B=2, S=8) ---
    x = jax.random.normal(kx, (2, 8, F), dtype=jnp.float32)
    ref = _reference(x, sublayer(x), gamma, beta, eps)

    out_generic = jax.block_until_ready(
        sublayer_connection(x, sublayer, gamma, beta, eps=eps))
    assert jnp.allclose(out_generic, ref, atol=1e-5, rtol=1e-5), "generic path mismatch"

    out_fused = jax.block_until_ready(
        sublayer_connection_fused_dense(x, W, b, gamma, beta, eps=eps))
    # MXU default f32 matmul precision may differ slightly from the XLA einsum reference.
    assert jnp.allclose(out_fused, ref, atol=2e-3, rtol=2e-3), "fused path mismatch"

    # --- shape 2: ragged rows (B=3, S=5) exercising the masked trailing block ---
    xr = jax.random.normal(kx2, (3, 5, F), dtype=jnp.float32)
    ref_r = _reference(xr, sublayer(xr), gamma, beta, eps)

    out_generic_r = jax.block_until_ready(
        sublayer_connection(xr, sublayer, gamma, beta, eps=eps))
    assert jnp.allclose(out_generic_r, ref_r, atol=1e-5, rtol=1e-5), "generic ragged mismatch"

    out_fused_r = jax.block_until_ready(
        sublayer_connection_fused_dense(xr, W, b, gamma, beta, eps=eps))
    assert jnp.allclose(out_fused_r, ref_r, atol=2e-3, rtol=2e-3), "fused ragged mismatch"

    print("KERNEL_OK")
</pallas_src>

<mosaic_0001>
module attributes {stable_mosaic.version = 11 : i64} {
  func.func @_add_layernorm_kernel(%arg0: i32, %arg1: memref<8x128xf32, #tpu.memory_space<vmem>>, %arg2: memref<8x128xf32, #tpu.memory_space<vmem>>, %arg3: memref<1x128xf32, #tpu.memory_space<vmem>>, %arg4: memref<1x128xf32, #tpu.memory_space<vmem>>, %arg5: memref<8x128xf32, #tpu.memory_space<vmem>>) attributes {dimension_semantics = [#tpu.dimension_semantics<parallel>], iteration_bounds = array<i64: 2>, scalar_prefetch = 0 : i64, scratch_operands = 0 : i64, tpu.core_type = #tpu.core_type<tc>, window_params = [{transform_indices = @transform_0, window_bounds = array<i64: 8, 128>}, {transform_indices = @transform_1, window_bounds = array<i64: 8, 128>}, {pipeline_mode = #tpu.pipeline_mode<synchronous>, transform_indices = @transform_2, window_bounds = array<i64: 1, 128>}, {pipeline_mode = #tpu.pipeline_mode<synchronous>, transform_indices = @transform_3, window_bounds = array<i64: 1, 128>}, {transform_indices = @transform_4, window_bounds = array<i64: 8, 128>}]} {
    %c0 = arith.constant 0 : index
    %c0_0 = arith.constant 0 : index
    %0 = vector.load %arg1[%c0, %c0_0] : memref<8x128xf32, #tpu.memory_space<vmem>>, vector<8x128xf32>
    %c0_1 = arith.constant 0 : index
    %c0_2 = arith.constant 0 : index
    %1 = vector.load %arg2[%c0_1, %c0_2] : memref<8x128xf32, #tpu.memory_space<vmem>>, vector<8x128xf32>
    %2 = arith.addf %0, %1 : vector<8x128xf32>
    %cst = arith.constant dense<0.000000e+00> : vector<8xf32>
    %3 = vector.multi_reduction <add>, %2, %cst [1] : vector<8x128xf32> to vector<8xf32>
    %4 = vector.shape_cast %3 : vector<8xf32> to vector<8x1xf32>
    %cst_3 = arith.constant 1.280000e+02 : f32
    %5 = vector.broadcast %cst_3 : f32 to vector<8x1xf32>
    %6 = arith.divf %4, %5 : vector<8x1xf32>
    %7 = vector.broadcast %6 : vector<8x1xf32> to vector<8x128xf32>
    %8 = arith.subf %2, %7 : vector<8x128xf32>
    %9 = arith.mulf %8, %8 : vector<8x128xf32>
    %cst_4 = arith.constant dense<0.000000e+00> : vector<8xf32>
    %10 = vector.multi_reduction <add>, %9, %cst_4 [1] : vector<8x128xf32> to vector<8xf32>
    %11 = vector.shape_cast %10 : vector<8xf32> to vector<8x1xf32>
    %cst_5 = arith.constant 0.00787401571 : f32
    %12 = vector.broadcast %cst_5 : f32 to vector<8x1xf32>
    %13 = arith.mulf %11, %12 : vector<8x1xf32>
    %14 = math.sqrt %13 : vector<8x1xf32>
    %cst_6 = arith.constant 9.99999997E-7 : f32
    %15 = vector.broadcast %cst_6 : f32 to vector<8x1xf32>
    %16 = arith.addf %14, %15 : vector<8x1xf32>
    %17 = tpu.reciprocal %16 : vector<8x1xf32> -> vector<8x1xf32>
    %c0_7 = arith.constant 0 : index
    %c0_8 = arith.constant 0 : index
    %18 = vector.load %arg3[%c0_7, %c0_8] : memref<1x128xf32, #tpu.memory_space<vmem>>, vector<1x128xf32>
    %19 = vector.broadcast %18 : vector<1x128xf32> to vector<8x128xf32>
    %20 = arith.mulf %19, %8 : vector<8x128xf32>
    %21 = vector.broadcast %17 : vector<8x1xf32> to vector<8x128xf32>
    %22 = arith.mulf %20, %21 : vector<8x128xf32>
    %c0_9 = arith.constant 0 : index
    %c0_10 = arith.constant 0 : index
    %23 = vector.load %arg4[%c0_9, %c0_10] : memref<1x128xf32, #tpu.memory_space<vmem>>, vector<1x128xf32>
    %24 = vector.broadcast %23 : vector<1x128xf32> to vector<8x128xf32>
    %25 = arith.addf %22, %24 : vector<8x128xf32>
    %c0_11 = arith.constant 0 : index
    %c0_12 = arith.constant 0 : index
    %26 = vector.load %arg5[%c0_11, %c0_12] : memref<8x128xf32, #tpu.memory_space<vmem>>, vector<8x128xf32>
    tpu.vector_store %arg5[%c0_11, %c0_12], %25 {strides = array<i32>} : memref<8x128xf32, #tpu.memory_space<vmem>>, vector<8x128xf32>,
    return
  }
  func.func @transform_0(%arg0: i32) -> (i32, i32) {
    %c0_i32 = arith.constant 0 : i32
    %c0_i32_0 = arith.constant 0 : i32
    return %arg0, %c0_i32 : i32, i32
  }
  func.func @transform_1(%arg0: i32) -> (i32, i32) {
    %c0_i32 = arith.constant 0 : i32
    %c0_i32_0 = arith.constant 0 : i32
    return %arg0, %c0_i32 : i32, i32
  }
  func.func @transform_2(%arg0: i32) -> (i32, i32) {
    %c0_i32 = arith.constant 0 : i32
    %c0_i32_0 = arith.constant 0 : i32
    %c0_i32_1 = arith.constant 0 : i32
    return %c0_i32, %c0_i32_0 : i32, i32
  }
  func.func @transform_3(%arg0: i32) -> (i32, i32) {
    %c0_i32 = arith.constant 0 : i32
    %c0_i32_0 = arith.constant 0 : i32
    %c0_i32_1 = arith.constant 0 : i32
    return %c0_i32, %c0_i32_0 : i32, i32
  }
  func.func @transform_4(%arg0: i32) -> (i32, i32) {
    %c0_i32 = arith.constant 0 : i32
    %c0_i32_0 = arith.constant 0 : i32
    return %arg0, %c0_i32 : i32, i32
  }
}

</mosaic_0001>

<llo_original>
// kernel: tpu_custom_call.1
$region0: #{tpu_custom_call.1}
  #allocation0 [shape = 'u32[]', space=smem, size = 0x4, offset = 0x4, fixed_abs, tag = 'smem constant byte address 0x4 - core index']
  #allocation1 [shape = 'u32[72,128]{1,0:T(1,128)}', space=vmem, size = 0x9000, scoped, tag = 'internal scratch']
  %s0 = inlined_call_operand.hbm [shape: f32[16,128], index: 0, kind: input, shape index: {}]
  %s1 = inlined_call_operand.hbm [shape: f32[16,128], index: 1, kind: input, shape index: {}]
  %s2 = inlined_call_operand.vmem [shape: f32[1,128], index: 2, kind: input, shape index: {}]
  %s3 = inlined_call_operand.vmem [shape: f32[1,128], index: 3, kind: input, shape index: {}]
  %s4 = inlined_call_operand.hbm [shape: f32[16,128], index: 4, kind: output, shape index: {}]
  %s5 = sld [smem:[#allocation0]]
  $region57: #{tpu_custom_call.1} parent=0
    _
  %s7 = ssub.s32 1, %s5
  %s8 = scalar_select 0, %s7, %s5
  $region1: #{tpu_custom_call.1} parent=0
    #allocation2 [shape = 'u8[8192]{0}', space=vmem, size = 0x2000, scoped, tag = 'input window, operand 0']
    #allocation3 [shape = 's32[2]{0}', space=sflag, size = 0x8, scoped, tag = 'scoped memory for tpu_custom_call.1']
    #allocation4 [shape = 's32[2]{0}', space=sflag, size = 0x8, scoped, tag = 'scoped memory for tpu_custom_call.1']
    #allocation5 [shape = 'u8[8192]{0}', space=vmem, size = 0x2000, scoped, tag = 'input window, operand 1']
    #allocation6 [shape = 's32[2]{0}', space=sflag, size = 0x8, scoped, tag = 'scoped memory for tpu_custom_call.1']
    #allocation7 [shape = 'u8[8192]{0}', space=vmem, size = 0x2000, scoped, tag = 'output window, operand 0']
    %9 = vsyncpa [#allocation3], 0
    %s10 = scalar_lea.sflag [#allocation3], 1
    %11 = vsyncpa %s10, 0
    %12 = vsyncpa [#allocation6], 0
    %s13 = scalar_lea.sflag [#allocation6], 1
    %14 = vsyncpa %s13, 0
    %15 = vsyncpa [#allocation4], 0
    %s16 = scalar_lea.sflag [#allocation4], 1
    %17 = vsyncpa %s16, 0
    loop: start=0, step=1, limit=4
    $region2: #{tpu_custom_call.1} parent=1 // loop_pre_header
      _
    $region3: #{tpu_custom_call.1} parent=1 // loop_header
      %s19 = sphi 0, %s23
      %p20 = scmp.ge.s32.totalorder %s19, 4
      %s29 = sphi 0, %s31
      %s32 = sphi 0, %s29
      %s33 = sphi 0, %s32
      %s49 = sphi 0, %s33
      %s55 = sphi 0, %s57
      %s58 = sphi 0, %s55
      %s59 = sphi 0, %s58
      %s75 = sphi 0, %s59
      %s79 = sphi 0, %s79
      %s81 = sphi 0, %s79
      %s82 = sphi 0, %s81
      %s96 = sphi 0, %s82
      %s100 = sphi 0, %s100
      %s102 = sphi 0, %s100
      %s103 = sphi 0, %s102
      %s117 = sphi 0, %s103
      %s123 = sphi 0, %s125
      %s126 = sphi 0, %s123
      %s127 = sphi 0, %s126
      %s143 = sphi 0, %s127
    $region4: #{tpu_custom_call.1} parent=1 // loop_header_branch
      %22 = sbr.rel (%p20) target = $region8
    $region5: #{tpu_custom_call.1} parent=1 // loop_body
      %s24 = ssub.s32 %s19, 1
      %s25 = ssub.s32 %s19, 2
      %s26 = sadd.s32 %s19, 1
      %s27 = ssub.s32 %s19, %s26
      %p28 = scmp.eq.s32.totalorder %s27, 0
      %s30 = sadd.s32 %s29, 1
      %s31 = scalar_select %p28, %s29, %s30
      %p34 = pneg %p28
      %p35 = scmp.eq.s32.totalorder %s19, 1
      %p36 = por %p34, %p35
      %p37 = scmp.ne.s32.totalorder %s29, %s32
      %p38 = scmp.eq.s32.totalorder %s19, 0
      %p39 = por %p37, %p38
      %p40 = scmp.ne.s32.totalorder %s29, %s32
      %p41 = scmp.eq.s32.totalorder %s24, 1
      %p42 = por %p40, %p41
      %p43 = scmp.ne.s32.totalorder %s32, %s33
      %p44 = scmp.eq.s32.totalorder %s24, 0
      %p45 = por %p43, %p44
      %p46 = scmp.ne.s32.totalorder %s32, %s33
      %p47 = scmp.eq.s32.totalorder %s25, 1
      %p48 = por %p46, %p47
      %p50 = scmp.ne.s32.totalorder %s33, %s49
      %p51 = scmp.eq.s32.totalorder %s25, 0
      %p52 = por %p50, %p51
      %s53 = ssub.s32 %s19, %s26
      %p54 = scmp.eq.s32.totalorder %s53, 0
      %s56 = sadd.s32 %s55, 1
      %s57 = scalar_select %p54, %s55, %s56
      %p60 = pneg %p54
      %p61 = scmp.eq.s32.totalorder %s19, 1
      %p62 = por %p60, %p61
      %p63 = scmp.ne.s32.totalorder %s55, %s58
      %p64 = scmp.eq.s32.totalorder %s19, 0
      %p65 = por %p63, %p64
      %p66 = scmp.ne.s32.totalorder %s55, %s58
      %p67 = scmp.eq.s32.totalorder %s24, 1
      %p68 = por %p66, %p67
      %p69 = scmp.ne.s32.totalorder %s58, %s59
      %p70 = scmp.eq.s32.totalorder %s24, 0
      %p71 = por %p69, %p70
      %p72 = scmp.ne.s32.totalorder %s58, %s59
      %p73 = scmp.eq.s32.totalorder %s25, 1
      %p74 = por %p72, %p73
      %p76 = scmp.ne.s32.totalorder %s59, %s75
      %p77 = scmp.eq.s32.totalorder %s25, 0
      %p78 = por %p76, %p77
      %s80 = sadd.s32 %s79, 1
      %p83 = scmp.eq.s32.totalorder %s19, 1
      %p84 = scmp.ne.s32.totalorder %s79, %s81
      %p85 = scmp.eq.s32.totalorder %s19, 0
      %p86 = por %p84, %p85
      %p87 = scmp.ne.s32.totalorder %s79, %s81
      %p88 = scmp.eq.s32.totalorder %s24, 1
      %p89 = por %p87, %p88
      %p90 = scmp.ne.s32.totalorder %s81, %s82
      %p91 = scmp.eq.s32.totalorder %s24, 0
      %p92 = por %p90, %p91
      %p93 = scmp.ne.s32.totalorder %s81, %s82
      %p94 = scmp.eq.s32.totalorder %s25, 1
      %p95 = por %p93, %p94
      %p97 = scmp.ne.s32.totalorder %s82, %s96
      %p98 = scmp.eq.s32.totalorder %s25, 0
      %p99 = por %p97, %p98
      %s101 = sadd.s32 %s100, 1
      %p104 = scmp.eq.s32.totalorder %s19, 1
      %p105 = scmp.ne.s32.totalorder %s100, %s102
      %p106 = scmp.eq.s32.totalorder %s19, 0
      %p107 = por %p105, %p106
      %p108 = scmp.ne.s32.totalorder %s100, %s102
      %p109 = scmp.eq.s32.totalorder %s24, 1
      %p110 = por %p108, %p109
      %p111 = scmp.ne.s32.totalorder %s102, %s103
      %p112 = scmp.eq.s32.totalorder %s24, 0
      %p113 = por %p111, %p112
      %p114 = scmp.ne.s32.totalorder %s102, %s103
      %p115 = scmp.eq.s32.totalorder %s25, 1
      %p116 = por %p114, %p115
      %p118 = scmp.ne.s32.totalorder %s103, %s117
      %p119 = scmp.eq.s32.totalorder %s25, 0
      %p120 = por %p118, %p119
      %s121 = ssub.s32 %s19, %s26
      %p122 = scmp.eq.s32.totalorder %s121, 0
      %s124 = sadd.s32 %s123, 1
      %s125 = scalar_select %p122, %s123, %s124
      %p128 = pneg %p122
      %p129 = scmp.eq.s32.totalorder %s19, 1
      %p130 = por %p128, %p129
      %p131 = scmp.ne.s32.totalorder %s123, %s126
      %p132 = scmp.eq.s32.totalorder %s19, 0
      %p133 = por %p131, %p132
      %p134 = scmp.ne.s32.totalorder %s123, %s126
      %p135 = scmp.eq.s32.totalorder %s24, 1
      %p136 = por %p134, %p135
      %p137 = scmp.ne.s32.totalorder %s126, %s127
      %p138 = scmp.eq.s32.totalorder %s24, 0
      %p139 = por %p137, %p138
      %p140 = scmp.ne.s32.totalorder %s126, %s127
      %p141 = scmp.eq.s32.totalorder %s25, 1
      %p142 = por %p140, %p141
      %p144 = scmp.ne.s32.totalorder %s127, %s143
      %p145 = scmp.eq.s32.totalorder %s25, 0
      %p146 = por %p144, %p145
      %p147 = scmp.le.s32.totalorder 1, %s19
      %p148 = scmp.lt.s32.totalorder %s19, 3
      %p149 = pnand %p147, %p148
      %p150 = pneg %p149
      // Predicated region
      $region9: #{tpu_custom_call.1} parent=5 // pred_check
        _
      $region10: #{tpu_custom_call.1} parent=5 // pred_check_branch
        %152 = sbr.rel (%p149) target = $region12
      $region11: #{tpu_custom_call.1} parent=5 // pred_region
        %s153 = ssub.s32 %s19, 1
        // Predicated region
        $region13: #{tpu_custom_call.1} parent=11 // pred_check
          %p154 = pneg %p92
        $region14: #{tpu_custom_call.1} parent=11 // pred_check_branch
          %156 = sbr.rel (%p154) target = $region16
        $region15: #{tpu_custom_call.1} parent=11 // pred_region
          _
        $region16: #{tpu_custom_call.1} parent=11 // pred_fallthru
          _
        // Predicated region
        $region17: #{tpu_custom_call.1} parent=11 // pred_check
          %p157 = pneg %p113
        $region18: #{tpu_custom_call.1} parent=11 // pred_check_branch
          %159 = sbr.rel (%p157) target = $region20
        $region19: #{tpu_custom_call.1} parent=11 // pred_region
          _
        $region20: #{tpu_custom_call.1} parent=11 // pred_fallthru
          _
      $region12: #{tpu_custom_call.1} parent=5 // pred_fallthru
        _
      %p160 = scmp.lt.s32.totalorder %s19, 2
      // Predicated region
      $region21: #{tpu_custom_call.1} parent=5 // pred_check
        %p161 = pneg %p160
      $region22: #{tpu_custom_call.1} parent=5 // pred_check_branch
        %163 = sbr.rel (%p161) target = $region24
      $region23: #{tpu_custom_call.1} parent=5 // pred_region
        // Predicated region
        $region25: #{tpu_custom_call.1} parent=23 // pred_check
          %p164 = pneg %p39
        $region26: #{tpu_custom_call.1} parent=23 // pred_check_branch
          %166 = sbr.rel (%p164) target = $region28
        $region27: #{tpu_custom_call.1} parent=23 // pred_region
          %s167 = sand.u32 %s29, 1
          %s168 = scalar_lea.sflag [#allocation3], %s167
          %s169 = sand.u32 %s29, 1
          %s170 = smul.addr %s169, 8
          %s171 = scalar_lea.vmem [#allocation2], %s170
          %173 = vsyncadd %s168, 0
          %s174 = smul.addr %s19, 8
          %s175 = scalar_lea.hbm %s0, %s174
          %s177 = sshll.u32 %s175, 4
          %s178 = int_to_ptr.hbm [resolvable:$true] %s177
          %s179 = sshll.u32 %s171, 4
          %s180 = int_to_ptr.vmem [resolvable:$true] %s179
          %182 = dma.hbm_to_vmem [thread:$0]  %s178, 128, %s180, %s168
        $region28: #{tpu_custom_call.1} parent=23 // pred_fallthru
          _
        // Predicated region
        $region29: #{tpu_custom_call.1} parent=23 // pred_check
          %p183 = pneg %p65
        $region30: #{tpu_custom_call.1} parent=23 // pred_check_branch
          %185 = sbr.rel (%p183) target = $region32
        $region31: #{tpu_custom_call.1} parent=23 // pred_region
          %s186 = sand.u32 %s55, 1
          %s187 = scalar_lea.sflag [#allocation6], %s186
          %s188 = sand.u32 %s55, 1
          %s189 = smul.addr %s188, 8
          %s190 = scalar_lea.vmem [#allocation5], %s189
          %192 = vsyncadd %s187, 0
          %s193 = smul.addr %s19, 8
          %s194 = scalar_lea.hbm %s1, %s193
          %s196 = sshll.u32 %s194, 4
          %s197 = int_to_ptr.hbm [resolvable:$true] %s196
          %s198 = sshll.u32 %s190, 4
          %s199 = int_to_ptr.vmem [resolvable:$true] %s198
          %201 = dma.hbm_to_vmem [thread:$0]  %s197, 128, %s199, %s187
        $region32: #{tpu_custom_call.1} parent=23 // pred_fallthru
          _
      $region24: #{tpu_custom_call.1} parent=5 // pred_fallthru
        _
      %p202 = scmp.le.s32.totalorder 1, %s19
      %p203 = scmp.lt.s32.totalorder %s19, 3
      %p204 = pnand %p202, %p203
      %p205 = pneg %p204
      // Predicated region
      $region33: #{tpu_custom_call.1} parent=5 // pred_check
        _
      $region34: #{tpu_custom_call.1} parent=5 // pred_check_branch
        %207 = sbr.rel (%p204) target = $region36
      $region35: #{tpu_custom_call.1} parent=5 // pred_region
        %s208 = ssub.s32 %s19, 1
        %s209 = sand.u32 %s32, 1
        %s210 = scalar_lea.sflag [#allocation3], %s209
        %s211 = sand.u32 %s32, 1
        %s212 = smul.addr %s211, 8
        %s213 = scalar_lea.vmem [#allocation2], %s212
        // Predicated region
        $region37: #{tpu_custom_call.1} parent=35 // pred_check
          %p214 = pneg %p45
        $region38: #{tpu_custom_call.1} parent=35 // pred_check_branch
          %216 = sbr.rel (%p214) target = $region40
        $region39: #{tpu_custom_call.1} parent=35 // pred_region
          %218 = dma.done %s210, 128
        $region40: #{tpu_custom_call.1} parent=35 // pred_fallthru
          _
        %s219 = sand.u32 %s58, 1
        %s220 = scalar_lea.sflag [#allocation6], %s219
        %s221 = sand.u32 %s58, 1
        %s222 = smul.addr %s221, 8
        %s223 = scalar_lea.vmem [#allocation5], %s222
        // Predicated region
        $region41: #{tpu_custom_call.1} parent=35 // pred_check
          %p224 = pneg %p71
        $region42: #{tpu_custom_call.1} parent=35 // pred_check_branch
          %226 = sbr.rel (%p224) target = $region44
        $region43: #{tpu_custom_call.1} parent=35 // pred_region
          %228 = dma.done %s220, 128
        $region44: #{tpu_custom_call.1} parent=35 // pred_fallthru
          _
        %s229 = sand.u32 %s32, 1
        %s230 = scalar_lea.sflag [#allocation3], %s229
        %s231 = sand.u32 %s32, 1
        %s232 = smul.addr %s231, 8
        %s233 = scalar_lea.vmem [#allocation2], %s232
        %p234 = pneg %p45
        %p235 = pneg %p42
        %s236 = sand.u32 %s58, 1
        %s237 = scalar_lea.sflag [#allocation6], %s236
        %s238 = sand.u32 %s58, 1
        %s239 = smul.addr %s238, 8
        %s240 = scalar_lea.vmem [#allocation5], %s239
        %p241 = pneg %p71
        %p242 = pneg %p68
        %p243 = pneg %p92
        %p244 = pneg %p89
        %p245 = pneg %p113
        %p246 = pneg %p110
        %p247 = pneg %p139
        %p248 = pneg %p136
        %s249 = sand.u32 %s126, 1
        %s250 = scalar_lea.sflag [#allocation4], %s249
        %s251 = sand.u32 %s126, 1
        %s252 = smul.addr %s251, 8
        %s253 = scalar_lea.vmem [#allocation7], %s252
        %v254 = vld [vmem:[%s213] sm:$0xff]
        %v255 = vld [vmem:[%s223] sm:$0xff]
        %v256 = vadd.f32 %v254, %v255
        %257 = vadd.xlane.f32.xlu0 %v256
        %v258 = vpop.xlane.xlu0 %257
        %v259 = vrcp.pop 128.0
        %v260 = vmul.f32 128.0, %v259
        %v261 = vsub.f32 1.0, %v260
        %v262 = vmul.f32 %v259, %v261
        %v263 = vadd.f32 %v259, %v262
        %vm264 = vweird.f32 %v259
        %v265 = vsel %vm264, %v259, %v263
        %v266 = vmul.f32 %v258, %v265
        %v267 = vsub.f32 %v256, %v266
        %v268 = vmul.f32 %v267, %v267
        %269 = vadd.xlane.f32.xlu0 %v268
        %v270 = vpop.xlane.xlu0 %269
        %v271 = vmul.f32 %v270, 0.007874016
        %v272 = vrsqrt.pop %v271
        %v273 = vmul.f32 %v272, %v271
        %v274 = vmul.f32 %v273, %v272
        %v275 = vmul.f32 0.5, %v274
        %v276 = vsub.f32 1.5, %v275
        %v277 = vmul.f32 %v272, %v276
        %v278 = vmul.f32 %v271, %v277
        %vm279 = vcmp.eq.f32.partialorder %v271, inf
        %v280 = vsel %vm279, %v271, %v278
        %vm281 = vcmp.eq.f32.partialorder %v271, 0.0
        %v282 = vand.u32 %v271, 2147483648
        %v283 = vsel %vm281, %v282, %v280
        %v284 = vadd.f32 %v283, 1e-06
        %v285 = vrcp.pop %v284
        %v286 = vmul.f32 %v284, %v285
        %v287 = vsub.f32 1.0, %v286
        %v288 = vmul.f32 %v285, %v287
        %v289 = vadd.f32 %v285, %v288
        %vm290 = vweird.f32 %v284
        %vm291 = vweird.f32 %v285
        %vm292 = vmor %vm290, %vm291
        %v293 = vsel %vm292, %v285, %v289
        %v294 = vand.u32 2147483647, %v284
        %vm295 = vcmp.eq.f32.partialorder %v294, 8.507059e+37
        %v296 = vand.u32 %v284, 2147483648
        %v297 = vor.u32 1.1754944e-38, %v296
        %v298 = vsel %vm295, %v297, %v293
        %v299 = vld [vmem:[%s2] sm:$0x1]
        %v301 = vperm.slane %v299, 0
        %v303 = vmul.f32 %v301, %v267
        %v304 = vmul.f32 %v303, %v298
        %v305 = vld [vmem:[%s3] sm:$0x1]
        %v307 = vperm.slane %v305, 0
        %v309 = vadd.f32 %v304, %v307
        %310 = vst [vmem:[%s253] sm:$0xff] %v309
        %s311 = sand.u32 %s126, 1
        %s312 = scalar_lea.sflag [#allocation4], %s311
        %s313 = sand.u32 %s126, 1
        %s314 = smul.addr %s313, 8
        %s315 = scalar_lea.vmem [#allocation7], %s314
        // Predicated region
        $region45: #{tpu_custom_call.1} parent=35 // pred_check
          %p316 = pneg %p136
        $region46: #{tpu_custom_call.1} parent=35 // pred_check_branch
          %318 = sbr.rel (%p316) target = $region48
        $region47: #{tpu_custom_call.1} parent=35 // pred_region
          %320 = vsyncadd %s312, 0
          %s321 = smul.addr %s24, 8
          %s322 = scalar_lea.hbm %s4, %s321
          %s324 = sshll.u32 %s315, 4
          %s325 = int_to_ptr.vmem [resolvable:$true] %s324
          %s326 = sshll.u32 %s322, 4
          %s327 = int_to_ptr.hbm [resolvable:$true] %s326
          %329 = dma.vmem_to_hbm [thread:$0]  %s325, 128, %s327, %s312
        $region48: #{tpu_custom_call.1} parent=35 // pred_fallthru
          _
      $region36: #{tpu_custom_call.1} parent=5 // pred_fallthru
        _
      %p330 = scmp.le.s32.totalorder 2, %s19
      // Predicated region
      $region49: #{tpu_custom_call.1} parent=5 // pred_check
        %p331 = pneg %p330
      $region50: #{tpu_custom_call.1} parent=5 // pred_check_branch
        %333 = sbr.rel (%p331) target = $region52
      $region51: #{tpu_custom_call.1} parent=5 // pred_region
        %s334 = ssub.s32 %s19, 2
        // Predicated region
        $region53: #{tpu_custom_call.1} parent=51 // pred_check
          %p335 = pneg %p142
        $region54: #{tpu_custom_call.1} parent=51 // pred_check_branch
          %337 = sbr.rel (%p335) target = $region56
        $region55: #{tpu_custom_call.1} parent=51 // pred_region
          %s338 = sand.u32 %s127, 1
          %s339 = scalar_lea.sflag [#allocation4], %s338
          %s340 = sand.u32 %s127, 1
          %s341 = smul.addr %s340, 8
          %s342 = scalar_lea.vmem [#allocation7], %s341
          %344 = dma.done %s339, 128
        $region56: #{tpu_custom_call.1} parent=51 // pred_fallthru
          _
      $region52: #{tpu_custom_call.1} parent=5 // pred_fallthru
        _
    $region6: #{tpu_custom_call.1} parent=1 // loop_footer
      %s23 = sadd.s32 1, %s19
    $region7: #{tpu_custom_call.1} parent=1 // loop_footer_branch
      %18 = sbr.rel target = $region3
    $region8: #{tpu_custom_call.1} parent=1 // loop_exit
      _
    %345 = vsyncpa [#allocation3], 1
    %s346 = scalar_lea.sflag [#allocation3], 1
    %347 = vsyncpa %s346, 1
    %348 = vsyncpa [#allocation6], 1
    %s349 = scalar_lea.sflag [#allocation6], 1
    %350 = vsyncpa %s349, 1
    %351 = vsyncpa [#allocation4], 1
    %s352 = scalar_lea.sflag [#allocation4], 1
    %353 = vsyncpa %s352, 1

</llo_original>
